<compile_context>
chip_gen: v5e
topology: v5e:2x2
jax: 0.10.0
libtpu: 0.0.40
codegen_flags: <defaults>
</compile_context>

<pallas_src>
import functools

import jax
import jax.numpy as jnp
from jax import lax
from jax.experimental import pallas as pl
from jax.experimental.pallas import tpu as pltpu


def _round_up(x, m):
    return (x + m - 1) // m * m


def _forward_logits(x_f32, w1, b1, w2, b2, w3, b3):
    """relu(x@w1+b1) -> relu(.@w2+b2) -> .@w3+b3; all contractions on the MXU."""
    h1 = jnp.dot(x_f32.astype(jnp.bfloat16), w1,
                 preferred_element_type=jnp.float32) + b1
    h1 = jnp.maximum(h1, 0.0)                                     # (chunk, 8)
    h2 = jnp.dot(h1.astype(jnp.bfloat16), w2,
                 preferred_element_type=jnp.float32) + b2
    h2 = jnp.maximum(h2, 0.0)                                     # (chunk, 8)
    logits = jnp.dot(h2.astype(jnp.bfloat16), w3,
                     preferred_element_type=jnp.float32) + b3
    return logits                                                 # (chunk, c_pad)


def _fused_kernel(x_ref, w1_ref, b1_ref, w2_ref, b2_ref, w3_ref, b3_ref,
                  o_ref, m_ref, l_ref, *,
                  tile_m, chunk, n_valid, n_pad, nb_classes):
    phase = pl.program_id(0)       # 0: stats over dim=0, 1: normalize
    t = pl.program_id(1)           # batch tile

    @pl.when((phase == 0) & (t == 0))
    def _init():
        m_ref[...] = jnp.full_like(m_ref, -jnp.inf)
        l_ref[...] = jnp.zeros_like(l_ref)

    w1 = w1_ref[...]; b1 = b1_ref[...]
    w2 = w2_ref[...]; b2 = b2_ref[...]
    w3 = w3_ref[...]; b3 = b3_ref[...]

    num_chunks = tile_m // chunk
    has_batch_pad = (n_pad != n_valid)        # static Python bool

    @pl.when(phase == 0)
    def _stats():
        def body(c, carry):
            m_run, l_run = carry
            r0 = pl.multiple_of(c * chunk, chunk)
            logits = _forward_logits(x_ref[pl.ds(r0, chunk), :],
                                     w1, b1, w2, b2, w3, b3)
            if has_batch_pad:
                row0 = t * tile_m + c * chunk

                def _mask(lg):
                    row = row0 + lax.broadcasted_iota(jnp.int32, lg.shape, 0)
                    return jnp.where(row < n_valid, lg, -jnp.inf)

                # Only the trailing chunk(s) of the last tile can contain
                # padding rows; skip the mask everywhere else.
                logits = lax.cond(row0 + chunk > n_valid,
                                  _mask, lambda lg: lg, logits)

            m_new = jnp.maximum(m_run, jnp.max(logits, axis=0, keepdims=True))
            l_new = (jnp.exp(m_run - m_new) * l_run
                     + jnp.sum(jnp.exp(logits - m_new), axis=0, keepdims=True))
            return m_new, l_new

        m_fin, l_fin = lax.fori_loop(0, num_chunks, body,
                                     (m_ref[...], l_ref[...]))
        m_ref[...] = m_fin
        l_ref[...] = l_fin

    @pl.when(phase == 1)
    def _normalize():
        m_g = m_ref[...]
        inv_l = pl.reciprocal(l_ref[...], approx=False)   # exact; single vreg

        def body(c, carry):
            r0 = pl.multiple_of(c * chunk, chunk)
            logits = _forward_logits(x_ref[pl.ds(r0, chunk), :],
                                     w1, b1, w2, b2, w3, b3)
            probs = jnp.exp(logits - m_g) * inv_l
            # Dropout(p=0.1) in eval mode == identity.
            o_ref[pl.ds(r0, chunk), :] = probs[:, :nb_classes]
            return carry

        lax.fori_loop(0, num_chunks, body, 0)


def custom_module_forward(x, w1, b1, w2, b2, w3, b3, *, tile_m=4096, chunk=128):
    """x: (N, nb_inputs) f32.  Weights W_i are (in, out); biases (1, out)."""
    n, d = x.shape
    nb_classes = w3.shape[1]

    h1_pad = _round_up(w1.shape[1], 8)        # 3 -> 8
    h2_pad = _round_up(w2.shape[1], 8)        # 5 -> 8
    c_pad = _round_up(nb_classes, 128)        # lane width for in-register logits

    # Zero-pad hidden/class dims (zero cols -> relu(0)=0 -> zero contribution),
    # and pre-cast the weights to bf16 once (MXU operands).  Biases stay f32.
    w1_p = jnp.zeros((d, h1_pad), jnp.float32).at[:, :w1.shape[1]].set(w1).astype(jnp.bfloat16)
    b1_p = jnp.zeros((1, h1_pad), jnp.float32).at[:, :b1.shape[1]].set(b1)
    w2_p = jnp.zeros((h1_pad, h2_pad), jnp.float32).at[:w2.shape[0], :w2.shape[1]].set(w2).astype(jnp.bfloat16)
    b2_p = jnp.zeros((1, h2_pad), jnp.float32).at[:, :b2.shape[1]].set(b2)
    w3_p = jnp.zeros((h2_pad, c_pad), jnp.float32).at[:w3.shape[0], :nb_classes].set(w3).astype(jnp.bfloat16)
    b3_p = jnp.zeros((1, c_pad), jnp.float32).at[:, :nb_classes].set(b3)

    # Batch tiling: big DMA tiles (amortize per-step overhead), small in-kernel
    # row chunks (bound vreg live ranges).
    if n <= chunk:
        tm = _round_up(n, 8)
        ck = tm
    else:
        ck = chunk
        bytes_per_row = 4 * (d + nb_classes)
        # keep double-buffered x + out tiles under ~24 MiB
        vmem_rows = max(ck, (24 * 1024 * 1024 // (2 * bytes_per_row)) // ck * ck)
        tm = min(_round_up(tile_m, ck), _round_up(n, ck), vmem_rows)
    n_pad = _round_up(n, tm)
    if n_pad != n:
        x = jnp.pad(x, ((0, n_pad - n), (0, 0)))
    n_tiles = n_pad // tm

    x_spec = pl.BlockSpec((tm, d), lambda p, t: (t, 0))
    # In phase 0 every step maps to output block 0 (never written, never
    # flushed because the index does not change); in phase 1 block t is
    # written once.  Output rows hit HBM exactly once, at true width.
    out_spec = pl.BlockSpec((tm, nb_classes), lambda p, t: (t * p, 0))

    def const_spec(a):
        return pl.BlockSpec(a.shape, lambda p, t: (0, 0))

    w_args = (w1_p, b1_p, w2_p, b2_p, w3_p, b3_p)

    kernel = functools.partial(_fused_kernel, tile_m=tm, chunk=ck,
                               n_valid=n, n_pad=n_pad, nb_classes=nb_classes)

    out = pl.pallas_call(
        kernel,
        out_shape=jax.ShapeDtypeStruct((n_pad, nb_classes), jnp.float32),
        grid_spec=pltpu.PrefetchScalarGridSpec(
            num_scalar_prefetch=0,
            grid=(2, n_tiles),
            in_specs=[x_spec] + [const_spec(a) for a in w_args],
            out_specs=out_spec,
            scratch_shapes=[pltpu.VMEM((1, c_pad), jnp.float32),   # running max
                            pltpu.VMEM((1, c_pad), jnp.float32)],  # running sum-exp
        ),
        compiler_params=pltpu.CompilerParams(
            dimension_semantics=("arbitrary", "arbitrary"),
            vmem_limit_bytes=32 * 1024 * 1024),
    )(x, *w_args)

    return out[:n]


def init_params(key, nb_inputs, nb_classes):
    """Deterministic synthetic parameters (PyTorch-Linear-like uniform init)."""
    ks = jax.random.split(key, 6)

    def lin(kw, kb, fan_in, fan_out):
        bound = 1.0 / jnp.sqrt(fan_in)
        w = jax.random.uniform(kw, (fan_in, fan_out), jnp.float32, -bound, bound)
        b = jax.random.uniform(kb, (1, fan_out), jnp.float32, -bound, bound)
        return w, b

    w1, b1 = lin(ks[0], ks[1], nb_inputs, 3)
    w2, b2 = lin(ks[2], ks[3], 3, 5)
    w3, b3 = lin(ks[4], ks[5], 5, nb_classes)
    return w1, b1, w2, b2, w3, b3


def reference_forward(x, w1, b1, w2, b2, w3, b3):
    """Pure-JAX reference (f32 everywhere)."""
    h1 = jnp.maximum(x @ w1 + b1, 0.0)
    h2 = jnp.maximum(h1 @ w2 + b2, 0.0)
    logits = h2 @ w3 + b3
    return jax.nn.softmax(logits, axis=0)   # nn.Softmax(dim=0)


if __name__ == "__main__":
    key = jax.random.PRNGKey(0)
    nb_inputs, nb_classes, N = 32, 4, 8

    kx, kp = jax.random.split(key)
    x = jax.random.normal(kx, (N, nb_inputs), jnp.float32)
    params = init_params(kp, nb_inputs, nb_classes)

    out = custom_module_forward(x, *params)
    jax.block_until_ready(out)

    assert out.shape == (N, nb_classes)
    # softmax over dim=0 -> each column sums to 1 (exact reciprocal => tight)
    assert jnp.allclose(jnp.sum(out, axis=0), jnp.ones((nb_classes,)), atol=1e-3)
    # compare against pure-JAX f32 reference (bf16 MXU layers => loose tol)
    ref = reference_forward(x, *params)
    assert jnp.allclose(out, ref, atol=1e-2)

    print("KERNEL_OK")
</pallas_src>

<mosaic_0001>
module attributes {stable_mosaic.version = 11 : i64} {
  func.func @_fused_kernel(%arg0: i32, %arg1: i32, %arg2: memref<8x32xf32, #tpu.memory_space<vmem>>, %arg3: memref<32x8xbf16, #tpu.memory_space<vmem>>, %arg4: memref<1x8xf32, #tpu.memory_space<vmem>>, %arg5: memref<8x8xbf16, #tpu.memory_space<vmem>>, %arg6: memref<1x8xf32, #tpu.memory_space<vmem>>, %arg7: memref<8x128xbf16, #tpu.memory_space<vmem>>, %arg8: memref<1x128xf32, #tpu.memory_space<vmem>>, %arg9: memref<8x4xf32, #tpu.memory_space<vmem>>, %arg10: memref<1x128xf32, #tpu.memory_space<vmem>>, %arg11: memref<1x128xf32, #tpu.memory_space<vmem>>) attributes {dimension_semantics = [#tpu.dimension_semantics<arbitrary>, #tpu.dimension_semantics<arbitrary>], iteration_bounds = array<i64: 2, 1>, scalar_prefetch = 0 : i64, scratch_operands = 2 : i64, tpu.core_type = #tpu.core_type<tc>, window_params = [{transform_indices = @transform_0, window_bounds = array<i64: 8, 32>}, {pipeline_mode = #tpu.pipeline_mode<synchronous>, transform_indices = @transform_1, window_bounds = array<i64: 32, 8>}, {pipeline_mode = #tpu.pipeline_mode<synchronous>, transform_indices = @transform_2, window_bounds = array<i64: 1, 8>}, {pipeline_mode = #tpu.pipeline_mode<synchronous>, transform_indices = @transform_3, window_bounds = array<i64: 8, 8>}, {pipeline_mode = #tpu.pipeline_mode<synchronous>, transform_indices = @transform_4, window_bounds = array<i64: 1, 8>}, {pipeline_mode = #tpu.pipeline_mode<synchronous>, transform_indices = @transform_5, window_bounds = array<i64: 8, 128>}, {pipeline_mode = #tpu.pipeline_mode<synchronous>, transform_indices = @transform_6, window_bounds = array<i64: 1, 128>}, {transform_indices = @transform_7, window_bounds = array<i64: 8, 4>}]} {
    %c0_i32 = arith.constant 0 : i32
    %0 = arith.cmpi eq, %arg0, %c0_i32 : i32
    %c0_i32_0 = arith.constant 0 : i32
    %1 = arith.cmpi eq, %arg1, %c0_i32_0 : i32
    %2 = arith.andi %0, %1 : i1
    %3 = arith.extui %2 : i1 to i32
    %c0_i32_1 = arith.constant 0 : i32
    %4 = arith.cmpi ne, %3, %c0_i32_1 : i32
    scf.if %4 {
      %cst = arith.constant 0xFF800000 : f32
      %17 = vector.broadcast %cst : f32 to vector<1x128xf32>
      %c0_16 = arith.constant 0 : index
      %c0_17 = arith.constant 0 : index
      %18 = vector.load %arg10[%c0_16, %c0_17] : memref<1x128xf32, #tpu.memory_space<vmem>>, vector<1x128xf32>
      tpu.vector_store %arg10[%c0_16, %c0_17], %17 {strides = array<i32>} : memref<1x128xf32, #tpu.memory_space<vmem>>, vector<1x128xf32>,
      %cst_18 = arith.constant 0.000000e+00 : f32
      %19 = vector.broadcast %cst_18 : f32 to vector<1x128xf32>
      %c0_19 = arith.constant 0 : index
      %c0_20 = arith.constant 0 : index
      %20 = vector.load %arg11[%c0_19, %c0_20] : memref<1x128xf32, #tpu.memory_space<vmem>>, vector<1x128xf32>
      tpu.vector_store %arg11[%c0_19, %c0_20], %19 {strides = array<i32>} : memref<1x128xf32, #tpu.memory_space<vmem>>, vector<1x128xf32>,
    } else {
    }
    %c0 = arith.constant 0 : index
    %c0_2 = arith.constant 0 : index
    %5 = vector.load %arg3[%c0, %c0_2] : memref<32x8xbf16, #tpu.memory_space<vmem>>, vector<32x8xbf16>
    %c0_3 = arith.constant 0 : index
    %c0_4 = arith.constant 0 : index
    %6 = vector.load %arg4[%c0_3, %c0_4] : memref<1x8xf32, #tpu.memory_space<vmem>>, vector<1x8xf32>
    %c0_5 = arith.constant 0 : index
    %c0_6 = arith.constant 0 : index
    %7 = vector.load %arg5[%c0_5, %c0_6] : memref<8x8xbf16, #tpu.memory_space<vmem>>, vector<8x8xbf16>
    %c0_7 = arith.constant 0 : index
    %c0_8 = arith.constant 0 : index
    %8 = vector.load %arg6[%c0_7, %c0_8] : memref<1x8xf32, #tpu.memory_space<vmem>>, vector<1x8xf32>
    %c0_9 = arith.constant 0 : index
    %c0_10 = arith.constant 0 : index
    %9 = vector.load %arg7[%c0_9, %c0_10] : memref<8x128xbf16, #tpu.memory_space<vmem>>, vector<8x128xbf16>
    %c0_11 = arith.constant 0 : index
    %c0_12 = arith.constant 0 : index
    %10 = vector.load %arg8[%c0_11, %c0_12] : memref<1x128xf32, #tpu.memory_space<vmem>>, vector<1x128xf32>
    %c0_i32_13 = arith.constant 0 : i32
    %11 = arith.cmpi eq, %arg0, %c0_i32_13 : i32
    %12 = arith.extui %11 : i1 to i32
    %c0_i32_14 = arith.constant 0 : i32
    %13 = arith.cmpi ne, %12, %c0_i32_14 : i32
    scf.if %13 {
      %c0_16 = arith.constant 0 : index
      %c0_17 = arith.constant 0 : index
      %17 = vector.load %arg10[%c0_16, %c0_17] : memref<1x128xf32, #tpu.memory_space<vmem>>, vector<1x128xf32>
      %c0_18 = arith.constant 0 : index
      %c0_19 = arith.constant 0 : index
      %18 = vector.load %arg11[%c0_18, %c0_19] : memref<1x128xf32, #tpu.memory_space<vmem>>, vector<1x128xf32>
      %c0_i32_20 = arith.constant 0 : i32
      %c8_i32 = arith.constant 8 : i32
      %19 = arith.muli %c0_i32_20, %c8_i32 : i32
      %20 = tpu.assume_multiple %19, 8 : i32
      %21 = arith.index_cast %20 : i32 to index
      %c0_21 = arith.constant 0 : index
      %22 = vector.load %arg2[%21, %c0_21] : memref<8x32xf32, #tpu.memory_space<vmem>>, vector<8x32xf32>
      %23 = arith.truncf %22 : vector<8x32xf32> to vector<8x32xbf16>
      %cst = arith.constant dense<0.000000e+00> : vector<8x8xf32>
      %24 = tpu.matmul %23, %5, %cst {dimension_numbers = #tpu.dot_dimension_numbers<[1], [0], [0], [1], [0, 0, 1, 1], [], []>} : vector<8x32xbf16>, vector<32x8xbf16>, vector<8x8xf32> -> vector<8x8xf32>
      %25 = vector.broadcast %6 : vector<1x8xf32> to vector<8x8xf32>
      %26 = arith.addf %24, %25 : vector<8x8xf32>
      %cst_22 = arith.constant 0.000000e+00 : f32
      %27 = vector.broadcast %cst_22 : f32 to vector<8x8xf32>
      %28 = arith.maximumf %26, %27 : vector<8x8xf32>
      %29 = arith.truncf %28 : vector<8x8xf32> to vector<8x8xbf16>
      %cst_23 = arith.constant dense<0.000000e+00> : vector<8x8xf32>
      %30 = tpu.matmul %29, %7, %cst_23 {dimension_numbers = #tpu.dot_dimension_numbers<[1], [0], [0], [1], [0, 0, 1, 1], [], []>} : vector<8x8xbf16>, vector<8x8xbf16>, vector<8x8xf32> -> vector<8x8xf32>
      %31 = vector.broadcast %8 : vector<1x8xf32> to vector<8x8xf32>
      %32 = arith.addf %30, %31 : vector<8x8xf32>
      %cst_24 = arith.constant 0.000000e+00 : f32
      %33 = vector.broadcast %cst_24 : f32 to vector<8x8xf32>
      %34 = arith.maximumf %32, %33 : vector<8x8xf32>
      %35 = arith.truncf %34 : vector<8x8xf32> to vector<8x8xbf16>
      %cst_25 = arith.constant dense<0.000000e+00> : vector<8x128xf32>
      %36 = tpu.matmul %35, %9, %cst_25 {dimension_numbers = #tpu.dot_dimension_numbers<[1], [0], [0], [1], [0, 0, 1, 1], [], []>} : vector<8x8xbf16>, vector<8x128xbf16>, vector<8x128xf32> -> vector<8x128xf32>
      %37 = vector.broadcast %10 : vector<1x128xf32> to vector<8x128xf32>
      %38 = arith.addf %36, %37 : vector<8x128xf32>
      %cst_26 = arith.constant dense<0xFF800000> : vector<128xf32>
      %39 = vector.multi_reduction <maximumf>, %38, %cst_26 [0] : vector<8x128xf32> to vector<128xf32>
      %40 = vector.shape_cast %39 : vector<128xf32> to vector<1x128xf32>
      %41 = arith.maximumf %17, %40 : vector<1x128xf32>
      %42 = arith.subf %17, %41 : vector<1x128xf32>
      %43 = math.exp %42 : vector<1x128xf32>
      %44 = arith.mulf %43, %18 : vector<1x128xf32>
      %45 = vector.broadcast %41 : vector<1x128xf32> to vector<8x128xf32>
      %46 = arith.subf %38, %45 : vector<8x128xf32>
      %47 = math.exp %46 : vector<8x128xf32>
      %cst_27 = arith.constant dense<0.000000e+00> : vector<128xf32>
      %48 = vector.multi_reduction <add>, %47, %cst_27 [0] : vector<8x128xf32> to vector<128xf32>
      %49 = vector.shape_cast %48 : vector<128xf32> to vector<1x128xf32>
      %50 = arith.addf %44, %49 : vector<1x128xf32>
      %c1_i32_28 = arith.constant 1 : i32
      %c0_29 = arith.constant 0 : index
      %c0_30 = arith.constant 0 : index
      %51 = vector.load %arg10[%c0_29, %c0_30] : memref<1x128xf32, #tpu.memory_space<vmem>>, vector<1x128xf32>
      tpu.vector_store %arg10[%c0_29, %c0_30], %41 {strides = array<i32>} : memref<1x128xf32, #tpu.memory_space<vmem>>, vector<1x128xf32>,
      %c0_31 = arith.constant 0 : index
      %c0_32 = arith.constant 0 : index
      %52 = vector.load %arg11[%c0_31, %c0_32] : memref<1x128xf32, #tpu.memory_space<vmem>>, vector<1x128xf32>
      tpu.vector_store %arg11[%c0_31, %c0_32], %50 {strides = array<i32>} : memref<1x128xf32, #tpu.memory_space<vmem>>, vector<1x128xf32>,
    } else {
    }
    %c1_i32 = arith.constant 1 : i32
    %14 = arith.cmpi eq, %arg0, %c1_i32 : i32
    %15 = arith.extui %14 : i1 to i32
    %c0_i32_15 = arith.constant 0 : i32
    %16 = arith.cmpi ne, %15, %c0_i32_15 : i32
    scf.if %16 {
      %c0_16 = arith.constant 0 : index
      %c0_17 = arith.constant 0 : index
      %17 = vector.load %arg10[%c0_16, %c0_17] : memref<1x128xf32, #tpu.memory_space<vmem>>, vector<1x128xf32>
      %c0_18 = arith.constant 0 : index
      %c0_19 = arith.constant 0 : index
      %18 = vector.load %arg11[%c0_18, %c0_19] : memref<1x128xf32, #tpu.memory_space<vmem>>, vector<1x128xf32>
      %19 = tpu.reciprocal %18 : vector<1x128xf32> -> vector<1x128xf32>
      %c0_i32_20 = arith.constant 0 : i32
      %c8_i32 = arith.constant 8 : i32
      %20 = arith.muli %c0_i32_20, %c8_i32 : i32
      %21 = tpu.assume_multiple %20, 8 : i32
      %22 = arith.index_cast %21 : i32 to index
      %c0_21 = arith.constant 0 : index
      %23 = vector.load %arg2[%22, %c0_21] : memref<8x32xf32, #tpu.memory_space<vmem>>, vector<8x32xf32>
      %24 = arith.truncf %23 : vector<8x32xf32> to vector<8x32xbf16>
      %cst = arith.constant dense<0.000000e+00> : vector<8x8xf32>
      %25 = tpu.matmul %24, %5, %cst {dimension_numbers = #tpu.dot_dimension_numbers<[1], [0], [0], [1], [0, 0, 1, 1], [], []>} : vector<8x32xbf16>, vector<32x8xbf16>, vector<8x8xf32> -> vector<8x8xf32>
      %26 = vector.broadcast %6 : vector<1x8xf32> to vector<8x8xf32>
      %27 = arith.addf %25, %26 : vector<8x8xf32>
      %cst_22 = arith.constant 0.000000e+00 : f32
      %28 = vector.broadcast %cst_22 : f32 to vector<8x8xf32>
      %29 = arith.maximumf %27, %28 : vector<8x8xf32>
      %30 = arith.truncf %29 : vector<8x8xf32> to vector<8x8xbf16>
      %cst_23 = arith.constant dense<0.000000e+00> : vector<8x8xf32>
      %31 = tpu.matmul %30, %7, %cst_23 {dimension_numbers = #tpu.dot_dimension_numbers<[1], [0], [0], [1], [0, 0, 1, 1], [], []>} : vector<8x8xbf16>, vector<8x8xbf16>, vector<8x8xf32> -> vector<8x8xf32>
      %32 = vector.broadcast %8 : vector<1x8xf32> to vector<8x8xf32>
      %33 = arith.addf %31, %32 : vector<8x8xf32>
      %cst_24 = arith.constant 0.000000e+00 : f32
      %34 = vector.broadcast %cst_24 : f32 to vector<8x8xf32>
      %35 = arith.maximumf %33, %34 : vector<8x8xf32>
      %36 = arith.truncf %35 : vector<8x8xf32> to vector<8x8xbf16>
      %cst_25 = arith.constant dense<0.000000e+00> : vector<8x128xf32>
      %37 = tpu.matmul %36, %9, %cst_25 {dimension_numbers = #tpu.dot_dimension_numbers<[1], [0], [0], [1], [0, 0, 1, 1], [], []>} : vector<8x8xbf16>, vector<8x128xbf16>, vector<8x128xf32> -> vector<8x128xf32>
      %38 = vector.broadcast %10 : vector<1x128xf32> to vector<8x128xf32>
      %39 = arith.addf %37, %38 : vector<8x128xf32>
      %40 = vector.broadcast %17 : vector<1x128xf32> to vector<8x128xf32>
      %41 = arith.subf %39, %40 : vector<8x128xf32>
      %42 = math.exp %41 : vector<8x128xf32>
      %43 = vector.broadcast %19 : vector<1x128xf32> to vector<8x128xf32>
      %44 = arith.mulf %42, %43 : vector<8x128xf32>
      %45 = vector.extract_strided_slice %44 {offsets = [0, 0], sizes = [8, 4], strides = [1, 1]} : vector<8x128xf32> to vector<8x4xf32>
      %46 = arith.index_cast %21 : i32 to index
      %c0_26 = arith.constant 0 : index
      %47 = vector.load %arg9[%46, %c0_26] : memref<8x4xf32, #tpu.memory_space<vmem>>, vector<8x4xf32>
      tpu.vector_store %arg9[%46, %c0_26], %45 {strides = array<i32>} : memref<8x4xf32, #tpu.memory_space<vmem>>, vector<8x4xf32>,
      %c1_i32_27 = arith.constant 1 : i32
    } else {
    }
    return
  }
  func.func @transform_0(%arg0: i32, %arg1: i32) -> (i32, i32) {
    %c0_i32 = arith.constant 0 : i32
    %c0_i32_0 = arith.constant 0 : i32
    return %arg1, %c0_i32 : i32, i32
  }
  func.func @transform_1(%arg0: i32, %arg1: i32) -> (i32, i32) {
    %c0_i32 = arith.constant 0 : i32
    %c0_i32_0 = arith.constant 0 : i32
    %c0_i32_1 = arith.constant 0 : i32
    return %c0_i32, %c0_i32_0 : i32, i32
  }
  func.func @transform_2(%arg0: i32, %arg1: i32) -> (i32, i32) {
    %c0_i32 = arith.constant 0 : i32
    %c0_i32_0 = arith.constant 0 : i32
    %c0_i32_1 = arith.constant 0 : i32
    return %c0_i32, %c0_i32_0 : i32, i32
  }
  func.func @transform_3(%arg0: i32, %arg1: i32) -> (i32, i32) {
    %c0_i32 = arith.constant 0 : i32
    %c0_i32_0 = arith.constant 0 : i32
    %c0_i32_1 = arith.constant 0 : i32
    return %c0_i32, %c0_i32_0 : i32, i32
  }
  func.func @transform_4(%arg0: i32, %arg1: i32) -> (i32, i32) {
    %c0_i32 = arith.constant 0 : i32
    %c0_i32_0 = arith.constant 0 : i32
    %c0_i32_1 = arith.constant 0 : i32
    return %c0_i32, %c0_i32_0 : i32, i32
  }
  func.func @transform_5(%arg0: i32, %arg1: i32) -> (i32, i32) {
    %c0_i32 = arith.constant 0 : i32
    %c0_i32_0 = arith.constant 0 : i32
    %c0_i32_1 = arith.constant 0 : i32
    return %c0_i32, %c0_i32_0 : i32, i32
  }
  func.func @transform_6(%arg0: i32, %arg1: i32) -> (i32, i32) {
    %c0_i32 = arith.constant 0 : i32
    %c0_i32_0 = arith.constant 0 : i32
    %c0_i32_1 = arith.constant 0 : i32
    return %c0_i32, %c0_i32_0 : i32, i32
  }
  func.func @transform_7(%arg0: i32, %arg1: i32) -> (i32, i32) {
    %0 = arith.muli %arg1, %arg0 : i32
    %c0_i32 = arith.constant 0 : i32
    %c0_i32_0 = arith.constant 0 : i32
    return %0, %c0_i32 : i32, i32
  }
}

</mosaic_0001>

<llo_original>
// kernel: tpu_custom_call.1
$region0: #{tpu_custom_call.1}
  #allocation0 [shape = 'u32[]', space=smem, size = 0x4, offset = 0x4, fixed_abs, tag = 'smem constant byte address 0x4 - core index']
  #allocation1 [shape = 'u32[72,128]{1,0:T(1,128)}', space=vmem, size = 0x9000, scoped, tag = 'internal scratch']
  #allocation2 [shape = 'f32[1,128]{1,0:T(1,128)}', space=vmem, size = 0x200, scoped, tag = 'scratch operand']
  #allocation3 [shape = 'f32[1,128]{1,0:T(1,128)}', space=vmem, size = 0x200, scoped, tag = 'scratch operand']
  %s0 = inlined_call_operand.vmem [shape: f32[8,32], index: 0, kind: input, shape index: {}]
  %s1 = inlined_call_operand.vmem [shape: bf16[32,8], index: 1, kind: input, shape index: {}]
  %s2 = inlined_call_operand.vmem [shape: f32[1,8], index: 2, kind: input, shape index: {}]
  %s3 = inlined_call_operand.vmem [shape: bf16[8,8], index: 3, kind: input, shape index: {}]
  %s4 = inlined_call_operand.vmem [shape: f32[1,8], index: 4, kind: input, shape index: {}]
  %s5 = inlined_call_operand.vmem [shape: bf16[8,128], index: 5, kind: input, shape index: {}]
  %s6 = inlined_call_operand.vmem [shape: f32[1,128], index: 6, kind: input, shape index: {}]
  %s7 = inlined_call_operand.vmem [shape: f32[8,4], index: 7, kind: output, shape index: {}]
  %s8 = sld [smem:[#allocation0]]
  $region73: #{tpu_custom_call.1} parent=0
    _
  %s10 = ssub.s32 1, %s8
  %s11 = scalar_select 0, %s10, %s8
  loop: start=0, step=1, limit=4
  $region2: #{tpu_custom_call.1} parent=0 // loop_pre_header
    _
  $region3: #{tpu_custom_call.1} parent=0 // loop_header
    %s13 = sphi 0, %s17
    %p14 = scmp.ge.s32.totalorder %s13, 4
    %s20 = sphi 0, %s32
    %s21 = sphi 0, %s28
    %s22 = sphi 0, %s20
    %s23 = sphi 0, %s21
    %s24 = sphi 0, %s22
    %s25 = sphi 0, %s23
    %s35 = sphi 0, %s37
    %s38 = sphi 0, %s35
    %s39 = sphi 0, %s38
    %s55 = sphi 0, %s39
    %s59 = sphi 0, %s59
    %s61 = sphi 0, %s59
    %s62 = sphi 0, %s61
    %s76 = sphi 0, %s62
    %s80 = sphi 0, %s80
    %s82 = sphi 0, %s80
    %s83 = sphi 0, %s82
    %s97 = sphi 0, %s83
    %s101 = sphi 0, %s101
    %s103 = sphi 0, %s101
    %s104 = sphi 0, %s103
    %s118 = sphi 0, %s104
    %s122 = sphi 0, %s122
    %s124 = sphi 0, %s122
    %s125 = sphi 0, %s124
    %s139 = sphi 0, %s125
    %s143 = sphi 0, %s143
    %s145 = sphi 0, %s143
    %s146 = sphi 0, %s145
    %s160 = sphi 0, %s146
    %s164 = sphi 0, %s164
    %s166 = sphi 0, %s164
    %s167 = sphi 0, %s166
    %s181 = sphi 0, %s167
    %s189 = sphi 0, %s191
    %s192 = sphi 0, %s189
    %s193 = sphi 0, %s192
    %s209 = sphi 0, %s193
  $region4: #{tpu_custom_call.1} parent=0 // loop_header_branch
    %16 = sbr.rel (%p14) target = $region8
  $region5: #{tpu_custom_call.1} parent=0 // loop_body
    %s18 = ssub.s32 %s13, 1
    %s19 = ssub.s32 %s13, 2
    %s26 = sadd.s32 1, %s21
    %p27 = scmp.ge.s32.totalorder %s26, 1
    %s28 = scalar_select %p27, 0, %s26
    %s29 = sadd.s32 1, %s20
    %s30 = scalar_select %p27, %s29, %s20
    %p31 = scmp.ge.s32.totalorder %s30, 2
    %s32 = scalar_select %p31, 0, %s30
    %s33 = ssub.s32 %s21, %s28
    %p34 = scmp.eq.s32.totalorder %s33, 0
    %s36 = sadd.s32 %s35, 1
    %s37 = scalar_select %p34, %s35, %s36
    %p40 = pneg %p34
    %p41 = scmp.eq.s32.totalorder %s13, 1
    %p42 = por %p40, %p41
    %p43 = scmp.ne.s32.totalorder %s35, %s38
    %p44 = scmp.eq.s32.totalorder %s13, 0
    %p45 = por %p43, %p44
    %p46 = scmp.ne.s32.totalorder %s35, %s38
    %p47 = scmp.eq.s32.totalorder %s18, 1
    %p48 = por %p46, %p47
    %p49 = scmp.ne.s32.totalorder %s38, %s39
    %p50 = scmp.eq.s32.totalorder %s18, 0
    %p51 = por %p49, %p50
    %p52 = scmp.ne.s32.totalorder %s38, %s39
    %p53 = scmp.eq.s32.totalorder %s19, 1
    %p54 = por %p52, %p53
    %p56 = scmp.ne.s32.totalorder %s39, %s55
    %p57 = scmp.eq.s32.totalorder %s19, 0
    %p58 = por %p56, %p57
    %s60 = sadd.s32 %s59, 1
    %p63 = scmp.eq.s32.totalorder %s13, 1
    %p64 = scmp.ne.s32.totalorder %s59, %s61
    %p65 = scmp.eq.s32.totalorder %s13, 0
    %p66 = por %p64, %p65
    %p67 = scmp.ne.s32.totalorder %s59, %s61
    %p68 = scmp.eq.s32.totalorder %s18, 1
    %p69 = por %p67, %p68
    %p70 = scmp.ne.s32.totalorder %s61, %s62
    %p71 = scmp.eq.s32.totalorder %s18, 0
    %p72 = por %p70, %p71
    %p73 = scmp.ne.s32.totalorder %s61, %s62
    %p74 = scmp.eq.s32.totalorder %s19, 1
    %p75 = por %p73, %p74
    %p77 = scmp.ne.s32.totalorder %s62, %s76
    %p78 = scmp.eq.s32.totalorder %s19, 0
    %p79 = por %p77, %p78
    %s81 = sadd.s32 %s80, 1
    %p84 = scmp.eq.s32.totalorder %s13, 1
    %p85 = scmp.ne.s32.totalorder %s80, %s82
    %p86 = scmp.eq.s32.totalorder %s13, 0
    %p87 = por %p85, %p86
    %p88 = scmp.ne.s32.totalorder %s80, %s82
    %p89 = scmp.eq.s32.totalorder %s18, 1
    %p90 = por %p88, %p89
    %p91 = scmp.ne.s32.totalorder %s82, %s83
    %p92 = scmp.eq.s32.totalorder %s18, 0
    %p93 = por %p91, %p92
    %p94 = scmp.ne.s32.totalorder %s82, %s83
    %p95 = scmp.eq.s32.totalorder %s19, 1
    %p96 = por %p94, %p95
    %p98 = scmp.ne.s32.totalorder %s83, %s97
    %p99 = scmp.eq.s32.totalorder %s19, 0
    %p100 = por %p98, %p99
    %s102 = sadd.s32 %s101, 1
    %p105 = scmp.eq.s32.totalorder %s13, 1
    %p106 = scmp.ne.s32.totalorder %s101, %s103
    %p107 = scmp.eq.s32.totalorder %s13, 0
    %p108 = por %p106, %p107
    %p109 = scmp.ne.s32.totalorder %s101, %s103
    %p110 = scmp.eq.s32.totalorder %s18, 1
    %p111 = por %p109, %p110
    %p112 = scmp.ne.s32.totalorder %s103, %s104
    %p113 = scmp.eq.s32.totalorder %s18, 0
    %p114 = por %p112, %p113
    %p115 = scmp.ne.s32.totalorder %s103, %s104
    %p116 = scmp.eq.s32.totalorder %s19, 1
    %p117 = por %p115, %p116
    %p119 = scmp.ne.s32.totalorder %s104, %s118
    %p120 = scmp.eq.s32.totalorder %s19, 0
    %p121 = por %p119, %p120
    %s123 = sadd.s32 %s122, 1
    %p126 = scmp.eq.s32.totalorder %s13, 1
    %p127 = scmp.ne.s32.totalorder %s122, %s124
    %p128 = scmp.eq.s32.totalorder %s13, 0
    %p129 = por %p127, %p128
    %p130 = scmp.ne.s32.totalorder %s122, %s124
    %p131 = scmp.eq.s32.totalorder %s18, 1
    %p132 = por %p130, %p131
    %p133 = scmp.ne.s32.totalorder %s124, %s125
    %p134 = scmp.eq.s32.totalorder %s18, 0
    %p135 = por %p133, %p134
    %p136 = scmp.ne.s32.totalorder %s124, %s125
    %p137 = scmp.eq.s32.totalorder %s19, 1
    %p138 = por %p136, %p137
    %p140 = scmp.ne.s32.totalorder %s125, %s139
    %p141 = scmp.eq.s32.totalorder %s19, 0
    %p142 = por %p140, %p141
    %s144 = sadd.s32 %s143, 1
    %p147 = scmp.eq.s32.totalorder %s13, 1
    %p148 = scmp.ne.s32.totalorder %s143, %s145
    %p149 = scmp.eq.s32.totalorder %s13, 0
    %p150 = por %p148, %p149
    %p151 = scmp.ne.s32.totalorder %s143, %s145
    %p152 = scmp.eq.s32.totalorder %s18, 1
    %p153 = por %p151, %p152
    %p154 = scmp.ne.s32.totalorder %s145, %s146
    %p155 = scmp.eq.s32.totalorder %s18, 0
    %p156 = por %p154, %p155
    %p157 = scmp.ne.s32.totalorder %s145, %s146
    %p158 = scmp.eq.s32.totalorder %s19, 1
    %p159 = por %p157, %p158
    %p161 = scmp.ne.s32.totalorder %s146, %s160
    %p162 = scmp.eq.s32.totalorder %s19, 0
    %p163 = por %p161, %p162
    %s165 = sadd.s32 %s164, 1
    %p168 = scmp.eq.s32.totalorder %s13, 1
    %p169 = scmp.ne.s32.totalorder %s164, %s166
    %p170 = scmp.eq.s32.totalorder %s13, 0
    %p171 = por %p169, %p170
    %p172 = scmp.ne.s32.totalorder %s164, %s166
    %p173 = scmp.eq.s32.totalorder %s18, 1
    %p174 = por %p172, %p173
    %p175 = scmp.ne.s32.totalorder %s166, %s167
    %p176 = scmp.eq.s32.totalorder %s18, 0
    %p177 = por %p175, %p176
    %p178 = scmp.ne.s32.totalorder %s166, %s167
    %p179 = scmp.eq.s32.totalorder %s19, 1
    %p180 = por %p178, %p179
    %p182 = scmp.ne.s32.totalorder %s167, %s181
    %p183 = scmp.eq.s32.totalorder %s19, 0
    %p184 = por %p182, %p183
    %s185 = smul.u32 %s21, %s20
    %s186 = smul.u32 %s28, %s32
    %s187 = ssub.s32 %s185, %s186
    %p188 = scmp.eq.s32.totalorder %s187, 0
    %s190 = sadd.s32 %s189, 1
    %s191 = scalar_select %p188, %s189, %s190
    %p194 = pneg %p188
    %p195 = scmp.eq.s32.totalorder %s13, 1
    %p196 = por %p194, %p195
    %p197 = scmp.ne.s32.totalorder %s189, %s192
    %p198 = scmp.eq.s32.totalorder %s13, 0
    %p199 = por %p197, %p198
    %p200 = scmp.ne.s32.totalorder %s189, %s192
    %p201 = scmp.eq.s32.totalorder %s18, 1
    %p202 = por %p200, %p201
    %p203 = scmp.ne.s32.totalorder %s192, %s193
    %p204 = scmp.eq.s32.totalorder %s18, 0
    %p205 = por %p203, %p204
    %p206 = scmp.ne.s32.totalorder %s192, %s193
    %p207 = scmp.eq.s32.totalorder %s19, 1
    %p208 = por %p206, %p207
    %p210 = scmp.ne.s32.totalorder %s193, %s209
    %p211 = scmp.eq.s32.totalorder %s19, 0
    %p212 = por %p210, %p211
    %p213 = scmp.le.s32.totalorder 1, %s13
    %p214 = scmp.lt.s32.totalorder %s13, 3
    %p215 = pnand %p213, %p214
    %p216 = pneg %p215
    // Predicated region
    $region9: #{tpu_custom_call.1} parent=5 // pred_check
      _
    $region10: #{tpu_custom_call.1} parent=5 // pred_check_branch
      %218 = sbr.rel (%p215) target = $region12
    $region11: #{tpu_custom_call.1} parent=5 // pred_region
      %s219 = ssub.s32 %s13, 1
      // Predicated region
      $region13: #{tpu_custom_call.1} parent=11 // pred_check
        %p220 = pneg %p51
      $region14: #{tpu_custom_call.1} parent=11 // pred_check_branch
        %222 = sbr.rel (%p220) target = $region16
      $region15: #{tpu_custom_call.1} parent=11 // pred_region
        %p223 = scmp.lt.s32.totalorder %s23, 0
        %s224 = scalar_select %p223, %s23, 0
        %s225 = smul.addr %s224, 8
        %s226 = scalar_lea.vmem %s0, %s225
      $region16: #{tpu_custom_call.1} parent=11 // pred_fallthru
        _
      // Predicated region
      $region17: #{tpu_custom_call.1} parent=11 // pred_check
        %p227 = pneg %p72
      $region18: #{tpu_custom_call.1} parent=11 // pred_check_branch
        %229 = sbr.rel (%p227) target = $region20
      $region19: #{tpu_custom_call.1} parent=11 // pred_region
        _
      $region20: #{tpu_custom_call.1} parent=11 // pred_fallthru
        _
      // Predicated region
      $region21: #{tpu_custom_call.1} parent=11 // pred_check
        %p230 = pneg %p93
      $region22: #{tpu_custom_call.1} parent=11 // pred_check_branch
        %232 = sbr.rel (%p230) target = $region24
      $region23: #{tpu_custom_call.1} parent=11 // pred_region
        _
      $region24: #{tpu_custom_call.1} parent=11 // pred_fallthru
        _
      // Predicated region
      $region25: #{tpu_custom_call.1} parent=11 // pred_check
        %p233 = pneg %p114
      $region26: #{tpu_custom_call.1} parent=11 // pred_check_branch
        %235 = sbr.rel (%p233) target = $region28
      $region27: #{tpu_custom_call.1} parent=11 // pred_region
        _
      $region28: #{tpu_custom_call.1} parent=11 // pred_fallthru
        _
      // Predicated region
      $region29: #{tpu_custom_call.1} parent=11 // pred_check
        %p236 = pneg %p135
      $region30: #{tpu_custom_call.1} parent=11 // pred_check_branch
        %238 = sbr.rel (%p236) target = $region32
      $region31: #{tpu_custom_call.1} parent=11 // pred_region
        _
      $region32: #{tpu_custom_call.1} parent=11 // pred_fallthru
        _
      // Predicated region
      $region33: #{tpu_custom_call.1} parent=11 // pred_check
        %p239 = pneg %p156
      $region34: #{tpu_custom_call.1} parent=11 // pred_check_branch
        %241 = sbr.rel (%p239) target = $region36
      $region35: #{tpu_custom_call.1} parent=11 // pred_region
        _
      $region36: #{tpu_custom_call.1} parent=11 // pred_fallthru
        _
      // Predicated region
      $region37: #{tpu_custom_call.1} parent=11 // pred_check
        %p242 = pneg %p177
      $region38: #{tpu_custom_call.1} parent=11 // pred_check_branch
        %244 = sbr.rel (%p242) target = $region40
      $region39: #{tpu_custom_call.1} parent=11 // pred_region
        _
      $region40: #{tpu_custom_call.1} parent=11 // pred_fallthru
        _
    $region12: #{tpu_custom_call.1} parent=5 // pred_fallthru
      _
    %p245 = scmp.lt.s32.totalorder %s13, 2
    // Predicated region
    $region41: #{tpu_custom_call.1} parent=5 // pred_check
      %p246 = pneg %p245
    $region42: #{tpu_custom_call.1} parent=5 // pred_check_branch
      %248 = sbr.rel (%p246) target = $region44
    $region43: #{tpu_custom_call.1} parent=5 // pred_region
      _
    $region44: #{tpu_custom_call.1} parent=5 // pred_fallthru
      _
    %p249 = scmp.le.s32.totalorder 1, %s13
    %p250 = scmp.lt.s32.totalorder %s13, 3
    %p251 = pnand %p249, %p250
    %p252 = pneg %p251
    // Predicated region
    $region45: #{tpu_custom_call.1} parent=5 // pred_check
      _
    $region46: #{tpu_custom_call.1} parent=5 // pred_check_branch
      %254 = sbr.rel (%p251) target = $region48
    $region47: #{tpu_custom_call.1} parent=5 // pred_region
      %s255 = ssub.s32 %s13, 1
      %p256 = scmp.lt.s32.totalorder %s23, 0
      %s257 = scalar_select %p256, %s23, 0
      %s258 = smul.addr %s257, 8
      %s259 = scalar_lea.vmem %s0, %s258
      %p260 = pneg %p51
      %p261 = pneg %p48
      %p262 = pneg %p72
      %p263 = pneg %p69
      %p264 = pneg %p93
      %p265 = pneg %p90
      %p266 = pneg %p114
      %p267 = pneg %p111
      %p268 = pneg %p135
      %p269 = pneg %p132
      %p270 = pneg %p156
      %p271 = pneg %p153
      %p272 = pneg %p177
      %p273 = pneg %p174
      %p274 = pneg %p205
      %p275 = pneg %p202
      %s276 = smul.u32 %s23, %s22
      %p277 = scmp.lt.s32.totalorder %s276, 0
      %s278 = scalar_select %p277, %s276, 0
      %s279 = smul.addr %s278, 8
      %s280 = scalar_lea.vmem %s7, %s279
      %p281 = scmp.lt.s32.totalorder %s23, 0
      %s282 = scalar_select %p281, %s23, 0
      %s283 = smul.addr %s282, 8
      %s284 = scalar_lea.vmem %s0, %s283
      %s285 = smul.u32 %s23, %s22
      %p286 = scmp.lt.s32.totalorder %s285, 0
      %s287 = scalar_select %p286, %s285, 0
      %s288 = smul.addr %s287, 8
      %s289 = scalar_lea.vmem %s7, %s288
      %s290 = smul.u32 %s23, %s22
      %p292 = scmp.eq.s32.totalorder %s22, 0
      %p293 = scmp.eq.s32.totalorder %s23, 0
      %p294 = pnand %p292, %p293
      %p295 = pneg %p294
      // Predicated region
      $region49: #{tpu_custom_call.1} parent=47 // pred_check
        _
      $region50: #{tpu_custom_call.1} parent=47 // pred_check_branch
        %297 = sbr.rel (%p294) target = $region52
      $region51: #{tpu_custom_call.1} parent=47 // pred_region
        %298 = vst [vmem:[#allocation2] sm:$0x1] -inf
        %299 = vst [vmem:[#allocation3] sm:$0x1] 0.0
      $region52: #{tpu_custom_call.1} parent=47 // pred_fallthru
        _
      %v300 = vld [vmem:[%s1] sm:$0xf]
      %v301 = vld [vmem:[%s1 + $0x4] sm:$0xf]
      %v302 = vld [vmem:[%s1 + $0x8] sm:$0xf]
      %v303 = vld [vmem:[%s1 + $0xc] sm:$0xf]
      %v304 = vld [vmem:[%s2] sm:$0x1]
      %v305 = vld [vmem:[%s3] sm:$0xf]
      %v306 = vld [vmem:[%s4] sm:$0x1]
      %v307 = vld [vmem:[%s5] sm:$0xf]
      %v308 = vld [vmem:[%s6] sm:$0x1]
      // Predicated region
      $region53: #{tpu_custom_call.1} parent=47 // pred_check
        %p309 = pneg %p292
      $region54: #{tpu_custom_call.1} parent=47 // pred_check_branch
        %311 = sbr.rel (%p309) target = $region56
      $region55: #{tpu_custom_call.1} parent=47 // pred_region
        %v312 = vld [vmem:[#allocation2] sm:$0x1]
        %v313 = vld [vmem:[#allocation3] sm:$0x1]
        %v314 = vld [vmem:[%s284] sm:$0xff]
        %v315 = vpack.c.bf16 %v314, %v314
        %v317 = vperm.slane %v304, 0
        %v323 = vunpack.c.l.b16 %v300
        %v324 = vunpack.c.l.b16 %v301
        %v325 = vunpack.c.l.b16 %v302
        %v326 = vunpack.c.l.b16 %v303
        %v327 = vpack.c.b16 %v324, %v323
        %v328 = vpack.c.b16 %v326, %v325
        %vm331 = vcmask 261120
        %v333 = vsel %vm331, %v315, 0
        %335 = vmatpush.bf16.msra.mxu0 0
        %336 = vmatpush.bf16.msra.mxu0 0
        %337 = vmatpush.bf16.msra.mxu0 0
        %338 = vmatpush.bf16.msra.mxu0 0
        %339 = vmatpush.bf16.msra.mxu0 0
        %340 = vmatpush.bf16.msra.mxu0 0
        %341 = vmatpush.bf16.msra.mxu0 %v328
        %342 = vmatpush.bf16.msra.mxu0 %v327
        %343 = vmatmul.bf16.gmra.mxu0 %v333
        %v344 = vpop.f32.mrf.mxu0
        %v345 = vadd.f32 %v317, %v344
        %v346 = vpop.f32.mrf.mxu0
        %347 = vdwg.mxu0
        %v348 = vmax.f32 %v345, 0.0
        %v349 = vpack.c.bf16 %v348, %v348
        %v351 = vperm.slane %v306, 0
        %vm353 = vcmask 64512
        %v355 = vsel %vm353, %v349, 0
        %vm357 = vcmask 1043456
        %v359 = vsel %vm357, %v305, 0
        %361 = vmatpush.bf16.msra.mxu0 0
        %362 = vmatpush.bf16.msra.mxu0 0
        %363 = vmatpush.bf16.msra.mxu0 0
        %364 = vmatpush.bf16.msra.mxu0 0
        %365 = vmatpush.bf16.msra.mxu0 0
        %366 = vmatpush.bf16.msra.mxu0 0
        %367 = vmatpush.bf16.msra.mxu0 0
        %368 = vmatpush.bf16.msra.mxu0 %v359
        %369 = vmatmul.bf16.gmra.mxu0 %v355
        %v370 = vpop.f32.mrf.mxu0
        %v371 = vadd.f32 %v351, %v370
        %v372 = vpop.f32.mrf.mxu0
        %373 = vdwg.mxu0
        %v374 = vmax.f32 %v371, 0.0
        %v375 = vpack.c.bf16 %v374, %v374
        %v377 = vperm.slane %v308, 0
        %v380 = vsel %vm353, %v375, 0
        %v383 = vsel %vm357, %v307, 0
        %385 = vmatpush.bf16.msra.mxu0 0
        %386 = vmatpush.bf16.msra.mxu0 0
        %387 = vmatpush.bf16.msra.mxu0 0
        %388 = vmatpush.bf16.msra.mxu0 0
        %389 = vmatpush.bf16.msra.mxu0 0
        %390 = vmatpush.bf16.msra.mxu0 0
        %391 = vmatpush.bf16.msra.mxu0 0
        %392 = vmatpush.bf16.msra.mxu0 %v383
        %393 = vmatmul.bf16.gmra.mxu0 %v380
        %v394 = vpop.f32.mrf.mxu0
        %v395 = vadd.f32 %v377, %v394
        %v396 = vpop.f32.mrf.mxu0
        %397 = vdwg.mxu0
        %v398 = vrot.slane %v395, 4
        %v399 = vmax.f32 %v395, %v398
        %v400 = vrot.slane %v399, 2
        %v401 = vmax.f32 %v399, %v400
        %v402 = vrot.slane %v401, 1
        %v403 = vmax.f32 %v401, %v402
        %v404 = vmax.f32 %v312, %v403
        %v405 = vsub.f32 %v312, %v404
        %v406 = vmul.f32 %v405, 1.442695
        %v407 = vpow.pop %v406
        %v408 = vmul.f32 %v407, %v313
        %v410 = vperm.slane %v404, 0
        %v412 = vsub.f32 %v395, %v410
        %v413 = vmul.f32 %v412, 1.442695
        %v414 = vpow.pop %v413
        %v415 = vrot.slane %v414, 4
        %v416 = vadd.f32 %v414, %v415
        %v417 = vrot.slane %v416, 2
        %v418 = vadd.f32 %v416, %v417
        %v419 = vrot.slane %v418, 1
        %v420 = vadd.f32 %v418, %v419
        %v421 = vadd.f32 %v408, %v420
        %422 = vst [vmem:[#allocation2] sm:$0x1] %v404
        %423 = vst [vmem:[#allocation3] sm:$0x1] %v421
      $region56: #{tpu_custom_call.1} parent=47 // pred_fallthru
        _
      %p424 = scmp.eq.s32.totalorder %s22, 1
      // Predicated region
      $region57: #{tpu_custom_call.1} parent=47 // pred_check
        %p425 = pneg %p424
      $region58: #{tpu_custom_call.1} parent=47 // pred_check_branch
        %427 = sbr.rel (%p425) target = $region60
      $region59: #{tpu_custom_call.1} parent=47 // pred_region
        %v428 = vld [vmem:[#allocation2] sm:$0x1]
        %v429 = vld [vmem:[#allocation3] sm:$0x1]
        %v430 = vrcp.pop %v429
        %v431 = vmul.f32 %v429, %v430
        %v432 = vsub.f32 1.0, %v431
        %v433 = vmul.f32 %v430, %v432
        %v434 = vadd.f32 %v430, %v433
        %vm435 = vweird.f32 %v429
        %vm436 = vweird.f32 %v430
        %vm437 = vmor %vm435, %vm436
        %v438 = vsel %vm437, %v430, %v434
        %v439 = vand.u32 2147483647, %v429
        %vm440 = vcmp.eq.f32.partialorder %v439, 8.507059e+37
        %v441 = vand.u32 %v429, 2147483648
        %v442 = vor.u32 1.1754944e-38, %v441
        %v443 = vsel %vm440, %v442, %v438
        %v444 = vld [vmem:[%s284] sm:$0xff]
        %v445 = vpack.c.bf16 %v444, %v444
        %v447 = vperm.slane %v304, 0
        %v453 = vunpack.c.l.b16 %v300
        %v454 = vunpack.c.l.b16 %v301
        %v455 = vunpack.c.l.b16 %v302
        %v456 = vunpack.c.l.b16 %v303
        %v457 = vpack.c.b16 %v454, %v453
        %v458 = vpack.c.b16 %v456, %v455
        %vm461 = vcmask 261120
        %v463 = vsel %vm461, %v445, 0
        %465 = vmatpush.bf16.msra.mxu0 0
        %466 = vmatpush.bf16.msra.mxu0 0
        %467 = vmatpush.bf16.msra.mxu0 0
        %468 = vmatpush.bf16.msra.mxu0 0
        %469 = vmatpush.bf16.msra.mxu0 0
        %470 = vmatpush.bf16.msra.mxu0 0
        %471 = vmatpush.bf16.msra.mxu0 %v458
        %472 = vmatpush.bf16.msra.mxu0 %v457
        %473 = vmatmul.bf16.gmra.mxu0 %v463
        %v474 = vpop.f32.mrf.mxu0
        %v475 = vadd.f32 %v447, %v474
        %v476 = vpop.f32.mrf.mxu0
        %477 = vdwg.mxu0
        %v478 = vmax.f32 %v475, 0.0
        %v479 = vpack.c.bf16 %v478, %v478
        %v481 = vperm.slane %v306, 0
        %vm483 = vcmask 64512
        %v485 = vsel %vm483, %v479, 0
        %vm487 = vcmask 1043456
        %v489 = vsel %vm487, %v305, 0
        %491 = vmatpush.bf16.msra.mxu0 0
        %492 = vmatpush.bf16.msra.mxu0 0
        %493 = vmatpush.bf16.msra.mxu0 0
        %494 = vmatpush.bf16.msra.mxu0 0
        %495 = vmatpush.bf16.msra.mxu0 0
        %496 = vmatpush.bf16.msra.mxu0 0
        %497 = vmatpush.bf16.msra.mxu0 0
        %498 = vmatpush.bf16.msra.mxu0 %v489
        %499 = vmatmul.bf16.gmra.mxu0 %v485
        %v500 = vpop.f32.mrf.mxu0
        %v501 = vadd.f32 %v481, %v500
        %v502 = vpop.f32.mrf.mxu0
        %503 = vdwg.mxu0
        %v504 = vmax.f32 %v501, 0.0
        %v505 = vpack.c.bf16 %v504, %v504
        %v507 = vperm.slane %v308, 0
        %v510 = vsel %vm483, %v505, 0
        %v513 = vsel %vm487, %v307, 0
        %515 = vmatpush.bf16.msra.mxu0 0
        %516 = vmatpush.bf16.msra.mxu0 0
        %517 = vmatpush.bf16.msra.mxu0 0
        %518 = vmatpush.bf16.msra.mxu0 0
        %519 = vmatpush.bf16.msra.mxu0 0
        %520 = vmatpush.bf16.msra.mxu0 0
        %521 = vmatpush.bf16.msra.mxu0 0
        %522 = vmatpush.bf16.msra.mxu0 %v513
        %523 = vmatmul.bf16.gmra.mxu0 %v510
        %v524 = vpop.f32.mrf.mxu0
        %v525 = vadd.f32 %v507, %v524
        %v526 = vpop.f32.mrf.mxu0
        %527 = vdwg.mxu0
        %v529 = vperm.slane %v428, 0
        %v531 = vsub.f32 %v525, %v529
        %v532 = vmul.f32 %v531, 1.442695
        %v533 = vpow.pop %v532
        %v535 = vperm.slane %v443, 0
        %v537 = vmul.f32 %v533, %v535
        %vm538 = vcmask 31744
        %539 = vst.msk [vmem:[%s289] sm:$0xff] %vm538, %v537
      $region60: #{tpu_custom_call.1} parent=47 // pred_fallthru
        _
      %s540 = smul.u32 %s23, %s22
      %p541 = scmp.lt.s32.totalorder %s540, 0
      %s542 = scalar_select %p541, %s540, 0
      %s543 = smul.addr %s542, 8
      %s544 = scalar_lea.vmem %s7, %s543
      // Predicated region
      $region61: #{tpu_custom_call.1} parent=47 // pred_check
        %p545 = pneg %p202
      $region62: #{tpu_custom_call.1} parent=47 // pred_check_branch
        %547 = sbr.rel (%p545) target = $region64
      $region63: #{tpu_custom_call.1} parent=47 // pred_region
        %s548 = smul.u32 %s23, %s22
      $region64: #{tpu_custom_call.1} parent=47 // pred_fallthru
        _
    $region48: #{tpu_custom_call.1} parent=5 // pred_fallthru
      _
    %p549 = scmp.le.s32.totalorder 2, %s13
    // Predicated region
    $region65: #{tpu_custom_call.1} parent=5 // pred_check
      %p550 = pneg %p549
    $region66: #{tpu_custom_call.1} parent=5 // pred_check_branch
      %552 = sbr.rel (%p550) target = $region68
    $region67: #{tpu_custom_call.1} parent=5 // pred_region
      %s553 = ssub.s32 %s13, 2
      // Predicated region
      $region69: #{tpu_custom_call.1} parent=67 // pred_check
        %p554 = pneg %p208
      $region70: #{tpu_custom_call.1} parent=67 // pred_check_branch
        %556 = sbr.rel (%p554) target = $region72
      $region71: #{tpu_custom_call.1} parent=67 // pred_region
        %s557 = smul.u32 %s25, %s24
        %p558 = scmp.lt.s32.totalorder %s557, 0
        %s559 = scalar_select %p558, %s557, 0
        %s560 = smul.addr %s559, 8
        %s561 = scalar_lea.vmem %s7, %s560
      $region72: #{tpu_custom_call.1} parent=67 // pred_fallthru
        _
    $region68: #{tpu_custom_call.1} parent=5 // pred_fallthru
      _
  $region6: #{tpu_custom_call.1} parent=0 // loop_footer
    %s17 = sadd.s32 1, %s13
  $region7: #{tpu_custom_call.1} parent=0 // loop_footer_branch
    %12 = sbr.rel target = $region3
  $region8: #{tpu_custom_call.1} parent=0 // loop_exit
    _

</llo_original>
